<compile_context>
chip_gen: v7x
topology: tpu7x:2x2x1
jax: 0.10.0
libtpu: 0.0.40
codegen_flags: <defaults>
</compile_context>

<pallas_src>
import jax
import jax.numpy as jnp
from jax.experimental import pallas as pl
from jax.experimental.pallas import tpu as pltpu


def _round_up(x: int, m: int) -> int:
    return ((x + m - 1) // m) * m


def _cdiv(a: int, b: int) -> int:
    return -(-a // b)


def nnue_kernel(x_ref, w1_ref, b1_ref, w2_ref, out_ref):
    # Cast the streamed f32 activations to bf16 in VMEM (VPU op, hides under
    # the x DMA), then fc1 on the MXU with f32 accumulation.  K=769 is ragged;
    # Mosaic masks the padded lanes of the contraction.
    x_bf16 = x_ref[...].astype(jnp.bfloat16)
    h = jnp.dot(x_bf16, w1_ref[...], preferred_element_type=jnp.float32)
    # bias + relu in f32 on the VPU.
    h = jnp.maximum(h + b1_ref[...], 0.0)
    # fc2 as a VPU multiply + XLU cross-lane reduction (an N=1 MXU matmul
    # would waste the MXU; the XLU work hides under the x DMA / MXU today).
    # TODO(synk): if profiles ever show the XLU as the saturated slot, move
    # fc2 onto the MXU (jnp.dot(h.astype(bf16), w2)) — it has >60% slack.
    y = jnp.sum(h * w2_ref[...], axis=-1, keepdims=True)
    out_ref[...] = y.astype(out_ref.dtype)


def simple_nnue_forward(x, w1, b1, w2, b2, *, tb_max=2048):
    """x: (B, input_dim) f32; w1: (input_dim, H); b1: (H,); w2: (H, 1); b2: (1,).

    Returns (B,) f32 — matches PyTorch `self.fc2(relu(self.fc1(x))).squeeze(-1)`
    (fc1 computed in bf16 with f32 accumulation; see numerics note above).
    """
    B, in_dim = x.shape
    in_dim_w, H = w1.shape
    assert in_dim_w == in_dim and w2.shape == (H, 1) and b1.shape == (H,)

    # Balanced batch tiling: padding waste is bounded to one rounding step
    # instead of potentially doubling the streamed rows.
    n_tiles = _cdiv(B, tb_max)
    TB = _round_up(_cdiv(B, n_tiles), 8)
    B_pad = n_tiles * TB

    # Only pad x (rows, f32) when the batch is ragged — no always-on pre-pass.
    # Padded rows produce relu(b1)·w2 garbage that is sliced off below.
    x_in = x if B_pad == B else jnp.pad(x, ((0, B_pad - B), (0, 0)))

    # Resident operands (tiny, one-time): bf16 w1, f32 bias / fc2 rows.
    w1_bf16 = w1.astype(jnp.bfloat16)
    b1_row = b1.reshape(1, H).astype(jnp.float32)
    w2_row = w2.reshape(1, H).astype(jnp.float32)

    # Serving-size batches (single batch tile): split H into two 128-wide
    # halves on a second parallel grid axis so both v7x TensorCores work
    # (each streams half of w1).  Disabled for multi-tile batches so the x
    # stream is never duplicated across cores.
    h_split = 2 if (n_tiles == 1 and H % 256 == 0) else 1
    Hb = H // h_split

    grid = (n_tiles, h_split)

    cost = pl.CostEstimate(
        flops=2 * B_pad * in_dim * H + 4 * B_pad * H,
        transcendentals=0,
        bytes_accessed=(B_pad * in_dim * 4          # streamed f32 x
                        + in_dim * H * 2            # resident bf16 w1 (once)
                        + 2 * H * 4                 # b1 + w2 rows
                        + h_split * B_pad * 4),     # outputs
    )

    out = pl.pallas_call(
        nnue_kernel,
        out_shape=jax.ShapeDtypeStruct((h_split, B_pad, 1), jnp.float32),
        grid=grid,
        in_specs=[
            # streamed per-tile activations; full-K block (769 == full dim).
            pl.BlockSpec((TB, in_dim), lambda i, j: (i, 0)),
            # weights resident in VMEM across all batch tiles (H-split on j).
            pl.BlockSpec((in_dim, Hb), lambda i, j: (0, j)),
            pl.BlockSpec((1, Hb), lambda i, j: (0, j)),
            pl.BlockSpec((1, Hb), lambda i, j: (0, j)),
        ],
        out_specs=pl.BlockSpec((None, TB, 1), lambda i, j: (j, i, 0)),
        compiler_params=pltpu.CompilerParams(
            dimension_semantics=("parallel", "parallel"),
            # ~20 MiB footprint at TB=2048 with f32 x double buffers: above
            # v5e's 16 MiB default scoped VMEM, comfortably under v7x's
            # 64 MiB physical.
            vmem_limit_bytes=40 * 1024 * 1024),
        cost_estimate=cost,
    )(x_in, w1_bf16, b1_row, w2_row)

    # Combine H-split partials (no-op when h_split == 1), add fc2 bias,
    # squeeze(-1), drop batch padding.
    return out.sum(axis=0)[:B, 0] + b2
    # TODO(synk): for tiny-batch serving, keep weights resident across calls
    # (cross-pallas_call prefetch) instead of re-streaming w1 every call; if
    # the x stream is ever quantized, use int8 on v5e/v6e but fp8 on v7x.


def init_params(key, input_dim=769, hidden_dim=256):
    """Deterministic PyTorch-Linear-style init (uniform +/- 1/sqrt(fan_in))."""
    k1, k2, k3, k4 = jax.random.split(key, 4)
    bound1 = 1.0 / jnp.sqrt(input_dim)
    bound2 = 1.0 / jnp.sqrt(hidden_dim)
    # Stored as (in_dim, out_dim) = transpose of PyTorch's (out, in) layout.
    w1 = jax.random.uniform(k1, (input_dim, hidden_dim), jnp.float32, -bound1, bound1)
    b1 = jax.random.uniform(k2, (hidden_dim,), jnp.float32, -bound1, bound1)
    w2 = jax.random.uniform(k3, (hidden_dim, 1), jnp.float32, -bound2, bound2)
    b2 = jax.random.uniform(k4, (1,), jnp.float32, -bound2, bound2)
    return w1, b1, w2, b2


if __name__ == "__main__":
    key = jax.random.PRNGKey(0)
    kx, kp = jax.random.split(key)

    batch, input_dim, hidden_dim = 8, 769, 256
    x = jax.random.normal(kx, (batch, input_dim), jnp.float32)
    w1, b1, w2, b2 = init_params(kp, input_dim, hidden_dim)

    out = simple_nnue_forward(x, w1, b1, w2, b2)
    out = jax.block_until_ready(out)
    assert out.shape == (batch,)

    # Reference with the same bf16 fc1 inputs / f32 accumulation as the kernel.
    ref_bf16 = (jnp.maximum(
        jnp.dot(x.astype(jnp.bfloat16), w1.astype(jnp.bfloat16),
                preferred_element_type=jnp.float32) + b1, 0.0) @ w2 + b2)[:, 0]
    assert jnp.allclose(out, ref_bf16, atol=2e-3, rtol=2e-3)

    # Loose check against the pure-f32 PyTorch-equivalent forward (bf16
    # rounding of x/w1 is the only approximation).
    ref_f32 = (jnp.maximum(x @ w1 + b1, 0.0) @ w2 + b2)[:, 0]
    assert jnp.allclose(out, ref_f32, atol=5e-2, rtol=5e-2)

    print("KERNEL_OK")
</pallas_src>

<mosaic_0001>
module attributes {stable_mosaic.version = 11 : i64} {
  func.func @nnue_kernel(%arg0: i32, %arg1: i32, %arg2: memref<8x769xf32, #tpu.memory_space<vmem>>, %arg3: memref<769x128xbf16, #tpu.memory_space<vmem>>, %arg4: memref<1x128xf32, #tpu.memory_space<vmem>>, %arg5: memref<1x128xf32, #tpu.memory_space<vmem>>, %arg6: memref<1x8x1xf32, #tpu.memory_space<vmem>>) attributes {dimension_semantics = [#tpu.dimension_semantics<parallel>, #tpu.dimension_semantics<parallel>], iteration_bounds = array<i64: 1, 2>, scalar_prefetch = 0 : i64, scratch_operands = 0 : i64, tpu.core_type = #tpu.core_type<tc>, window_params = [{transform_indices = @transform_0, window_bounds = array<i64: 8, 769>}, {transform_indices = @transform_1, window_bounds = array<i64: 769, 128>}, {transform_indices = @transform_2, window_bounds = array<i64: 1, 128>}, {transform_indices = @transform_3, window_bounds = array<i64: 1, 128>}, {transform_indices = @transform_4, window_bounds = array<i64: 1, 8, 1>}]} {
    %c0 = arith.constant 0 : index
    %c0_0 = arith.constant 0 : index
    %0 = vector.load %arg2[%c0, %c0_0] : memref<8x769xf32, #tpu.memory_space<vmem>>, vector<8x769xf32>
    %1 = arith.truncf %0 : vector<8x769xf32> to vector<8x769xbf16>
    %c0_1 = arith.constant 0 : index
    %c0_2 = arith.constant 0 : index
    %2 = vector.load %arg3[%c0_1, %c0_2] : memref<769x128xbf16, #tpu.memory_space<vmem>>, vector<769x128xbf16>
    %cst = arith.constant dense<0.000000e+00> : vector<8x128xf32>
    %3 = tpu.matmul %1, %2, %cst {dimension_numbers = #tpu.dot_dimension_numbers<[1], [0], [0], [1], [0, 0, 1, 1], [], []>} : vector<8x769xbf16>, vector<769x128xbf16>, vector<8x128xf32> -> vector<8x128xf32>
    %c0_3 = arith.constant 0 : index
    %c0_4 = arith.constant 0 : index
    %4 = vector.load %arg4[%c0_3, %c0_4] : memref<1x128xf32, #tpu.memory_space<vmem>>, vector<1x128xf32>
    %5 = vector.broadcast %4 : vector<1x128xf32> to vector<8x128xf32>
    %6 = arith.addf %3, %5 : vector<8x128xf32>
    %cst_5 = arith.constant 0.000000e+00 : f32
    %7 = vector.broadcast %cst_5 : f32 to vector<8x128xf32>
    %8 = arith.maximumf %6, %7 : vector<8x128xf32>
    %c0_6 = arith.constant 0 : index
    %c0_7 = arith.constant 0 : index
    %9 = vector.load %arg5[%c0_6, %c0_7] : memref<1x128xf32, #tpu.memory_space<vmem>>, vector<1x128xf32>
    %10 = vector.broadcast %9 : vector<1x128xf32> to vector<8x128xf32>
    %11 = arith.mulf %8, %10 : vector<8x128xf32>
    %cst_8 = arith.constant dense<0.000000e+00> : vector<8xf32>
    %12 = vector.multi_reduction <add>, %11, %cst_8 [1] : vector<8x128xf32> to vector<8xf32>
    %13 = vector.shape_cast %12 : vector<8xf32> to vector<8x1xf32>
    %c0_9 = arith.constant 0 : index
    %c0_10 = arith.constant 0 : index
    %c0_11 = arith.constant 0 : index
    %14 = vector.load %arg6[%c0_9, %c0_10, %c0_11] : memref<1x8x1xf32, #tpu.memory_space<vmem>>, vector<1x8x1xf32>
    %15 = vector.shape_cast %14 : vector<1x8x1xf32> to vector<8x1xf32>
    %16 = vector.shape_cast %13 : vector<8x1xf32> to vector<1x8x1xf32>
    tpu.vector_store %arg6[%c0_9, %c0_10, %c0_11], %16 {strides = array<i32>} : memref<1x8x1xf32, #tpu.memory_space<vmem>>, vector<1x8x1xf32>,
    return
  }
  func.func @transform_0(%arg0: i32, %arg1: i32) -> (i32, i32) {
    %c0_i32 = arith.constant 0 : i32
    %c0_i32_0 = arith.constant 0 : i32
    return %arg0, %c0_i32 : i32, i32
  }
  func.func @transform_1(%arg0: i32, %arg1: i32) -> (i32, i32) {
    %c0_i32 = arith.constant 0 : i32
    %c0_i32_0 = arith.constant 0 : i32
    return %c0_i32, %arg1 : i32, i32
  }
  func.func @transform_2(%arg0: i32, %arg1: i32) -> (i32, i32) {
    %c0_i32 = arith.constant 0 : i32
    %c0_i32_0 = arith.constant 0 : i32
    return %c0_i32, %arg1 : i32, i32
  }
  func.func @transform_3(%arg0: i32, %arg1: i32) -> (i32, i32) {
    %c0_i32 = arith.constant 0 : i32
    %c0_i32_0 = arith.constant 0 : i32
    return %c0_i32, %arg1 : i32, i32
  }
  func.func @transform_4(%arg0: i32, %arg1: i32) -> (i32, i32, i32) {
    %c0_i32 = arith.constant 0 : i32
    %c0_i32_0 = arith.constant 0 : i32
    return %arg1, %arg0, %c0_i32 : i32, i32, i32
  }
}

</mosaic_0001>

<llo_original>
// kernel: tpu_custom_call.1
$region0: #{tpu_custom_call.1}
  #allocation0 [shape = 'u32[]', space=smem, size = 0x4, offset = 0x4, fixed_abs, tag = 'smem constant byte address 0x4 - core index']
  #allocation1 [shape = 'u32[144,128]{1,0:T(1,128)}', space=vmem, size = 0x12000, scoped, tag = 'internal scratch']
  %s0 = inlined_call_operand.hbm [shape: f32[8,769], index: 0, kind: input, shape index: {}]
  %s1 = inlined_call_operand.hbm [shape: bf16[769,256], index: 1, kind: input, shape index: {}]
  %s2 = inlined_call_operand.vmem [shape: f32[1,256], index: 2, kind: input, shape index: {}]
  %s3 = inlined_call_operand.vmem [shape: f32[1,256], index: 3, kind: input, shape index: {}]
  %s4 = inlined_call_operand.vmem [shape: f32[2,8,1], index: 4, kind: output, shape index: {}]
  %s5 = sld [smem:[#allocation0]]
  $region57: #{tpu_custom_call.1} parent=0
    _
  %s7 = ssub.s32 1, %s5
  %s8 = scalar_select 0, %s7, %s5
  $region1: #{tpu_custom_call.1} parent=0
    #allocation2 [shape = 'u8[28672]{0}', space=vmem, size = 0x7000, scoped, tag = 'input window, operand 0, single buffered']
    #allocation3 [shape = 's32[2]{0}', space=sflag, size = 0x8, scoped, tag = 'scoped memory for tpu_custom_call.1']
    #allocation4 [shape = 'u8[397312]{0}', space=vmem, size = 0x61000, scoped, tag = 'input window, operand 1']
    #allocation5 [shape = 's32[2]{0}', space=sflag, size = 0x8, scoped, tag = 'scoped memory for tpu_custom_call.1']
    %9 = vsyncpa [#allocation3], 0
    %10 = vsyncpa [#allocation5], 0
    %s11 = scalar_lea.sflag [#allocation5], 1
    %12 = vsyncpa %s11, 0
    loop: start=0, step=1, limit=4
    $region2: #{tpu_custom_call.1} parent=1 // loop_pre_header
      _
    $region3: #{tpu_custom_call.1} parent=1 // loop_header
      %s14 = sphi 0, %s18
      %p15 = scmp.ge.s32.totalorder %s14, 4
      %s21 = sphi 0, %s33
      %s22 = sphi 0, %s29
      %s23 = sphi 0, %s21
      %s24 = sphi 0, %s22
      %s25 = sphi 0, %s23
      %s26 = sphi 0, %s24
      %s36 = sphi 0, %s38
      %s39 = sphi 0, %s36
      %s40 = sphi 0, %s39
      %s56 = sphi 0, %s40
      %s62 = sphi 0, %s64
      %s65 = sphi 0, %s62
      %s66 = sphi 0, %s65
      %s82 = sphi 0, %s66
      %s88 = sphi 0, %s90
      %s91 = sphi 0, %s88
      %s92 = sphi 0, %s91
      %s108 = sphi 0, %s92
      %s114 = sphi 0, %s116
      %s117 = sphi 0, %s114
      %s118 = sphi 0, %s117
      %s134 = sphi 0, %s118
      %s142 = sphi 0, %s144
      %s145 = sphi 0, %s142
      %s146 = sphi 0, %s145
      %s162 = sphi 0, %s146
    $region4: #{tpu_custom_call.1} parent=1 // loop_header_branch
      %17 = sbr.rel (%p15) target = $region8
    $region5: #{tpu_custom_call.1} parent=1 // loop_body
      %s19 = ssub.s32 %s14, 1
      %s20 = ssub.s32 %s14, 2
      %s27 = sadd.s32 1, %s22
      %p28 = scmp.ge.s32.totalorder %s27, 2
      %s29 = scalar_select %p28, 0, %s27
      %s30 = sadd.s32 1, %s21
      %s31 = scalar_select %p28, %s30, %s21
      %p32 = scmp.ge.s32.totalorder %s31, 1
      %s33 = scalar_select %p32, 0, %s31
      %s34 = ssub.s32 %s21, %s33
      %p35 = scmp.eq.s32.totalorder %s34, 0
      %s37 = sadd.s32 %s36, 1
      %s38 = scalar_select %p35, %s36, %s37
      %p41 = pneg %p35
      %p42 = scmp.eq.s32.totalorder %s14, 1
      %p43 = por %p41, %p42
      %p44 = scmp.ne.s32.totalorder %s36, %s39
      %p45 = scmp.eq.s32.totalorder %s14, 0
      %p46 = por %p44, %p45
      %p47 = scmp.ne.s32.totalorder %s36, %s39
      %p48 = scmp.eq.s32.totalorder %s19, 1
      %p49 = por %p47, %p48
      %p50 = scmp.ne.s32.totalorder %s39, %s40
      %p51 = scmp.eq.s32.totalorder %s19, 0
      %p52 = por %p50, %p51
      %p53 = scmp.ne.s32.totalorder %s39, %s40
      %p54 = scmp.eq.s32.totalorder %s20, 1
      %p55 = por %p53, %p54
      %p57 = scmp.ne.s32.totalorder %s40, %s56
      %p58 = scmp.eq.s32.totalorder %s20, 0
      %p59 = por %p57, %p58
      %s60 = ssub.s32 %s22, %s29
      %p61 = scmp.eq.s32.totalorder %s60, 0
      %s63 = sadd.s32 %s62, 1
      %s64 = scalar_select %p61, %s62, %s63
      %p67 = pneg %p61
      %p68 = scmp.eq.s32.totalorder %s14, 1
      %p69 = por %p67, %p68
      %p70 = scmp.ne.s32.totalorder %s62, %s65
      %p71 = scmp.eq.s32.totalorder %s14, 0
      %p72 = por %p70, %p71
      %p73 = scmp.ne.s32.totalorder %s62, %s65
      %p74 = scmp.eq.s32.totalorder %s19, 1
      %p75 = por %p73, %p74
      %p76 = scmp.ne.s32.totalorder %s65, %s66
      %p77 = scmp.eq.s32.totalorder %s19, 0
      %p78 = por %p76, %p77
      %p79 = scmp.ne.s32.totalorder %s65, %s66
      %p80 = scmp.eq.s32.totalorder %s20, 1
      %p81 = por %p79, %p80
      %p83 = scmp.ne.s32.totalorder %s66, %s82
      %p84 = scmp.eq.s32.totalorder %s20, 0
      %p85 = por %p83, %p84
      %s86 = ssub.s32 %s22, %s29
      %p87 = scmp.eq.s32.totalorder %s86, 0
      %s89 = sadd.s32 %s88, 1
      %s90 = scalar_select %p87, %s88, %s89
      %p93 = pneg %p87
      %p94 = scmp.eq.s32.totalorder %s14, 1
      %p95 = por %p93, %p94
      %p96 = scmp.ne.s32.totalorder %s88, %s91
      %p97 = scmp.eq.s32.totalorder %s14, 0
      %p98 = por %p96, %p97
      %p99 = scmp.ne.s32.totalorder %s88, %s91
      %p100 = scmp.eq.s32.totalorder %s19, 1
      %p101 = por %p99, %p100
      %p102 = scmp.ne.s32.totalorder %s91, %s92
      %p103 = scmp.eq.s32.totalorder %s19, 0
      %p104 = por %p102, %p103
      %p105 = scmp.ne.s32.totalorder %s91, %s92
      %p106 = scmp.eq.s32.totalorder %s20, 1
      %p107 = por %p105, %p106
      %p109 = scmp.ne.s32.totalorder %s92, %s108
      %p110 = scmp.eq.s32.totalorder %s20, 0
      %p111 = por %p109, %p110
      %s112 = ssub.s32 %s22, %s29
      %p113 = scmp.eq.s32.totalorder %s112, 0
      %s115 = sadd.s32 %s114, 1
      %s116 = scalar_select %p113, %s114, %s115
      %p119 = pneg %p113
      %p120 = scmp.eq.s32.totalorder %s14, 1
      %p121 = por %p119, %p120
      %p122 = scmp.ne.s32.totalorder %s114, %s117
      %p123 = scmp.eq.s32.totalorder %s14, 0
      %p124 = por %p122, %p123
      %p125 = scmp.ne.s32.totalorder %s114, %s117
      %p126 = scmp.eq.s32.totalorder %s19, 1
      %p127 = por %p125, %p126
      %p128 = scmp.ne.s32.totalorder %s117, %s118
      %p129 = scmp.eq.s32.totalorder %s19, 0
      %p130 = por %p128, %p129
      %p131 = scmp.ne.s32.totalorder %s117, %s118
      %p132 = scmp.eq.s32.totalorder %s20, 1
      %p133 = por %p131, %p132
      %p135 = scmp.ne.s32.totalorder %s118, %s134
      %p136 = scmp.eq.s32.totalorder %s20, 0
      %p137 = por %p135, %p136
      %s138 = ssub.s32 %s22, %s29
      %s139 = ssub.s32 %s21, %s33
      %s140 = sor.u32 %s138, %s139
      %p141 = scmp.eq.s32.totalorder %s140, 0
      %s143 = sadd.s32 %s142, 1
      %s144 = scalar_select %p141, %s142, %s143
      %p147 = pneg %p141
      %p148 = scmp.eq.s32.totalorder %s14, 1
      %p149 = por %p147, %p148
      %p150 = scmp.ne.s32.totalorder %s142, %s145
      %p151 = scmp.eq.s32.totalorder %s14, 0
      %p152 = por %p150, %p151
      %p153 = scmp.ne.s32.totalorder %s142, %s145
      %p154 = scmp.eq.s32.totalorder %s19, 1
      %p155 = por %p153, %p154
      %p156 = scmp.ne.s32.totalorder %s145, %s146
      %p157 = scmp.eq.s32.totalorder %s19, 0
      %p158 = por %p156, %p157
      %p159 = scmp.ne.s32.totalorder %s145, %s146
      %p160 = scmp.eq.s32.totalorder %s20, 1
      %p161 = por %p159, %p160
      %p163 = scmp.ne.s32.totalorder %s146, %s162
      %p164 = scmp.eq.s32.totalorder %s20, 0
      %p165 = por %p163, %p164
      %p166 = scmp.le.s32.totalorder 1, %s14
      %p167 = scmp.lt.s32.totalorder %s14, 3
      %p168 = pnand %p166, %p167
      %p169 = pneg %p168
      // Predicated region
      $region9: #{tpu_custom_call.1} parent=5 // pred_check
        _
      $region10: #{tpu_custom_call.1} parent=5 // pred_check_branch
        %171 = sbr.rel (%p168) target = $region12
      $region11: #{tpu_custom_call.1} parent=5 // pred_region
        %s172 = ssub.s32 %s14, 1
        // Predicated region
        $region13: #{tpu_custom_call.1} parent=11 // pred_check
          %p173 = pneg %p52
        $region14: #{tpu_custom_call.1} parent=11 // pred_check_branch
          %175 = sbr.rel (%p173) target = $region16
        $region15: #{tpu_custom_call.1} parent=11 // pred_region
          %s177 = ssub.s32 896, 896
          %178 = vsyncadd [#allocation3], %s177
          %s179 = smul.addr %s23, 7
          %s180 = smul.addr %s179, 128
          %s181 = scalar_lea.hbm %s0, %s180
          %s183 = sshll.u32 [#allocation2], 4
          %s184 = int_to_ptr.vmem [resolvable:$true] %s183
          %186 = dma.hbm_to_vmem [thread:$0]  %s181, 896, %s184, [#allocation3]
        $region16: #{tpu_custom_call.1} parent=11 // pred_fallthru
          _
      $region12: #{tpu_custom_call.1} parent=5 // pred_fallthru
        _
      %p187 = scmp.lt.s32.totalorder %s14, 2
      // Predicated region
      $region17: #{tpu_custom_call.1} parent=5 // pred_check
        %p188 = pneg %p187
      $region18: #{tpu_custom_call.1} parent=5 // pred_check_branch
        %190 = sbr.rel (%p188) target = $region20
      $region19: #{tpu_custom_call.1} parent=5 // pred_region
        // Predicated region
        $region21: #{tpu_custom_call.1} parent=19 // pred_check
          %p191 = pneg %p72
        $region22: #{tpu_custom_call.1} parent=19 // pred_check_branch
          %193 = sbr.rel (%p191) target = $region24
        $region23: #{tpu_custom_call.1} parent=19 // pred_region
          %s194 = sand.u32 %s62, 1
          %s195 = scalar_lea.sflag [#allocation5], %s194
          %s196 = sand.u32 %s62, 1
          %s197 = smul.addr %s196, 388
          %s198 = scalar_lea.vmem [#allocation4], %s197
          %s200 = ssub.s32 6208, 6208
          %201 = vsyncadd %s195, %s200
          %s202 = smul.addr %s22, 64
          %s203 = scalar_lea.hbm %s1, %s202
          %s204 = sshll.u32 %s198, 4
          %s205 = int_to_ptr.vmem [resolvable:$true] %s204
          %210 = dma.hbm_to_vmem [thread:$0]  %s203, 6208, %s205, %s195, 128, 64, 4
        $region24: #{tpu_custom_call.1} parent=19 // pred_fallthru
          _
        // Predicated region
        $region25: #{tpu_custom_call.1} parent=19 // pred_check
          %p211 = pneg %p98
        $region26: #{tpu_custom_call.1} parent=19 // pred_check_branch
          %213 = sbr.rel (%p211) target = $region28
        $region27: #{tpu_custom_call.1} parent=19 // pred_region
          %p214 = scmp.lt.s32.totalorder %s22, 1
          %s215 = scalar_select %p214, %s22, 1
          %s216 = scalar_lea.vmem %s2, %s215
        $region28: #{tpu_custom_call.1} parent=19 // pred_fallthru
          _
        // Predicated region
        $region29: #{tpu_custom_call.1} parent=19 // pred_check
          %p217 = pneg %p124
        $region30: #{tpu_custom_call.1} parent=19 // pred_check_branch
          %219 = sbr.rel (%p217) target = $region32
        $region31: #{tpu_custom_call.1} parent=19 // pred_region
          %p220 = scmp.lt.s32.totalorder %s22, 1
          %s221 = scalar_select %p220, %s22, 1
          %s222 = scalar_lea.vmem %s3, %s221
        $region32: #{tpu_custom_call.1} parent=19 // pred_fallthru
          _
      $region20: #{tpu_custom_call.1} parent=5 // pred_fallthru
        _
      %p223 = scmp.le.s32.totalorder 1, %s14
      %p224 = scmp.lt.s32.totalorder %s14, 3
      %p225 = pnand %p223, %p224
      %p226 = pneg %p225
      // Predicated region
      $region33: #{tpu_custom_call.1} parent=5 // pred_check
        _
      $region34: #{tpu_custom_call.1} parent=5 // pred_check_branch
        %228 = sbr.rel (%p225) target = $region36
      $region35: #{tpu_custom_call.1} parent=5 // pred_region
        %s229 = ssub.s32 %s14, 1
        // Predicated region
        $region37: #{tpu_custom_call.1} parent=35 // pred_check
          %p230 = pneg %p52
        $region38: #{tpu_custom_call.1} parent=35 // pred_check_branch
          %232 = sbr.rel (%p230) target = $region40
        $region39: #{tpu_custom_call.1} parent=35 // pred_region
          %233 = dma.done [#allocation3], 896
        $region40: #{tpu_custom_call.1} parent=35 // pred_fallthru
          _
        %s234 = sand.u32 %s65, 1
        %s235 = scalar_lea.sflag [#allocation5], %s234
        %s236 = sand.u32 %s65, 1
        %s237 = smul.addr %s236, 388
        %s238 = scalar_lea.vmem [#allocation4], %s237
        // Predicated region
        $region41: #{tpu_custom_call.1} parent=35 // pred_check
          %p239 = pneg %p78
        $region42: #{tpu_custom_call.1} parent=35 // pred_check_branch
          %241 = sbr.rel (%p239) target = $region44
        $region43: #{tpu_custom_call.1} parent=35 // pred_region
          %242 = dma.done %s235, 6208
        $region44: #{tpu_custom_call.1} parent=35 // pred_fallthru
          _
        %p243 = pneg %p52
        %p244 = pneg %p49
        %s245 = sand.u32 %s65, 1
        %s246 = scalar_lea.sflag [#allocation5], %s245
        %s247 = sand.u32 %s65, 1
        %s248 = smul.addr %s247, 388
        %s249 = scalar_lea.vmem [#allocation4], %s248
        %p250 = pneg %p78
        %p251 = pneg %p75
        %p252 = scmp.lt.s32.totalorder %s24, 1
        %s253 = scalar_select %p252, %s24, 1
        %s254 = scalar_lea.vmem %s2, %s253
        %p255 = pneg %p104
        %p256 = pneg %p101
        %p257 = scmp.lt.s32.totalorder %s24, 1
        %s258 = scalar_select %p257, %s24, 1
        %s259 = scalar_lea.vmem %s3, %s258
        %p260 = pneg %p130
        %p261 = pneg %p127
        %p262 = pneg %p158
        %p263 = pneg %p155
        %p264 = scmp.lt.s32.totalorder %s24, 1
        %s265 = scalar_select %p264, %s24, 1
        %p266 = scmp.lt.s32.totalorder %s23, 0
        %s267 = scalar_select %p266, %s23, 0
        %s268 = sadd.s32 %s267, %s265
        %s269 = smul.addr %s268, 8
        %s270 = scalar_lea.vmem %s4, %s269
        %p271 = scmp.lt.s32.totalorder %s24, 1
        %s272 = scalar_select %p271, %s24, 1
        %s273 = scalar_lea.vmem %s2, %s272
        %p274 = scmp.lt.s32.totalorder %s24, 1
        %s275 = scalar_select %p274, %s24, 1
        %s276 = scalar_lea.vmem %s3, %s275
        %p277 = scmp.lt.s32.totalorder %s24, 1
        %s278 = scalar_select %p277, %s24, 1
        %p279 = scmp.lt.s32.totalorder %s23, 0
        %s280 = scalar_select %p279, %s23, 0
        %s281 = sadd.s32 %s280, %s278
        %s282 = smul.addr %s281, 8
        %s283 = scalar_lea.vmem %s4, %s282
        %v285 = vld [vmem:[#allocation2] sm:$0xff]
        %v286 = vld [vmem:[#allocation2 + $0x8] sm:$0xff]
        %v287 = vld [vmem:[#allocation2 + $0x10] sm:$0xff]
        %v288 = vld [vmem:[#allocation2 + $0x18] sm:$0xff]
        %v289 = vld [vmem:[#allocation2 + $0x20] sm:$0xff]
        %v290 = vld [vmem:[#allocation2 + $0x28] sm:$0xff]
        %v291 = vld [vmem:[#allocation2 + $0x30] sm:$0xff]
        %v292 = vpack.c.bf16 %v285, %v285
        %v293 = vpack.c.bf16 %v286, %v286
        %v294 = vpack.c.bf16 %v287, %v287
        %v295 = vpack.c.bf16 %v288, %v288
        %v296 = vpack.c.bf16 %v289, %v289
        %v297 = vpack.c.bf16 %v290, %v290
        %v298 = vpack.c.bf16 %v291, %v291
        %v299 = vld [vmem:[%s238] sm:$0xf]
        %v300 = vld [vmem:[%s238 + $0x4] sm:$0xf]
        %v301 = vld [vmem:[%s238 + $0x8] sm:$0xf]
        %v302 = vld [vmem:[%s238 + $0xc] sm:$0xf]
        %v303 = vld [vmem:[%s238 + $0x10] sm:$0xf]
        %v304 = vld [vmem:[%s238 + $0x14] sm:$0xf]
        %v305 = vld [vmem:[%s238 + $0x18] sm:$0xf]
        %v306 = vld [vmem:[%s238 + $0x1c] sm:$0xf]
        %v307 = vld [vmem:[%s238 + $0x20] sm:$0xf]
        %v308 = vld [vmem:[%s238 + $0x24] sm:$0xf]
        %v309 = vld [vmem:[%s238 + $0x28] sm:$0xf]
        %v310 = vld [vmem:[%s238 + $0x2c] sm:$0xf]
        %v311 = vld [vmem:[%s238 + $0x30] sm:$0xf]
        %v312 = vld [vmem:[%s238 + $0x34] sm:$0xf]
        %v313 = vld [vmem:[%s238 + $0x38] sm:$0xf]
        %v314 = vld [vmem:[%s238 + $0x3c] sm:$0xf]
        %v315 = vld [vmem:[%s238 + $0x40] sm:$0xf]
        %v316 = vld [vmem:[%s238 + $0x44] sm:$0xf]
        %v317 = vld [vmem:[%s238 + $0x48] sm:$0xf]
        %v318 = vld [vmem:[%s238 + $0x4c] sm:$0xf]
        %v319 = vld [vmem:[%s238 + $0x50] sm:$0xf]
        %v320 = vld [vmem:[%s238 + $0x54] sm:$0xf]
        %v321 = vld [vmem:[%s238 + $0x58] sm:$0xf]
        %v322 = vld [vmem:[%s238 + $0x5c] sm:$0xf]
        %v323 = vld [vmem:[%s238 + $0x60] sm:$0xf]
        %v324 = vld [vmem:[%s238 + $0x64] sm:$0xf]
        %v325 = vld [vmem:[%s238 + $0x68] sm:$0xf]
        %v326 = vld [vmem:[%s238 + $0x6c] sm:$0xf]
        %v327 = vld [vmem:[%s238 + $0x70] sm:$0xf]
        %v328 = vld [vmem:[%s238 + $0x74] sm:$0xf]
        %v329 = vld [vmem:[%s238 + $0x78] sm:$0xf]
        %v330 = vld [vmem:[%s238 + $0x7c] sm:$0xf]
        %v331 = vld [vmem:[%s238 + $0x80] sm:$0xf]
        %v332 = vld [vmem:[%s238 + $0x84] sm:$0xf]
        %v333 = vld [vmem:[%s238 + $0x88] sm:$0xf]
        %v334 = vld [vmem:[%s238 + $0x8c] sm:$0xf]
        %v335 = vld [vmem:[%s238 + $0x90] sm:$0xf]
        %v336 = vld [vmem:[%s238 + $0x94] sm:$0xf]
        %v337 = vld [vmem:[%s238 + $0x98] sm:$0xf]
        %v338 = vld [vmem:[%s238 + $0x9c] sm:$0xf]
        %v339 = vld [vmem:[%s238 + $0xa0] sm:$0xf]
        %v340 = vld [vmem:[%s238 + $0xa4] sm:$0xf]
        %v341 = vld [vmem:[%s238 + $0xa8] sm:$0xf]
        %v342 = vld [vmem:[%s238 + $0xac] sm:$0xf]
        %v343 = vld [vmem:[%s238 + $0xb0] sm:$0xf]
        %v344 = vld [vmem:[%s238 + $0xb4] sm:$0xf]
        %v345 = vld [vmem:[%s238 + $0xb8] sm:$0xf]
        %v346 = vld [vmem:[%s238 + $0xbc] sm:$0xf]
        %v347 = vld [vmem:[%s238 + $0xc0] sm:$0xf]
        %v348 = vld [vmem:[%s238 + $0xc4] sm:$0xf]
        %v349 = vld [vmem:[%s238 + $0xc8] sm:$0xf]
        %v350 = vld [vmem:[%s238 + $0xcc] sm:$0xf]
        %v351 = vld [vmem:[%s238 + $0xd0] sm:$0xf]
        %v352 = vld [vmem:[%s238 + $0xd4] sm:$0xf]
        %v353 = vld [vmem:[%s238 + $0xd8] sm:$0xf]
        %v354 = vld [vmem:[%s238 + $0xdc] sm:$0xf]
        %v355 = vld [vmem:[%s238 + $0xe0] sm:$0xf]
        %v356 = vld [vmem:[%s238 + $0xe4] sm:$0xf]
        %v357 = vld [vmem:[%s238 + $0xe8] sm:$0xf]
        %v358 = vld [vmem:[%s238 + $0xec] sm:$0xf]
        %v359 = vld [vmem:[%s238 + $0xf0] sm:$0xf]
        %v360 = vld [vmem:[%s238 + $0xf4] sm:$0xf]
        %v361 = vld [vmem:[%s238 + $0xf8] sm:$0xf]
        %v362 = vld [vmem:[%s238 + $0xfc] sm:$0xf]
        %v363 = vld [vmem:[%s238 + $0x100] sm:$0xf]
        %v364 = vld [vmem:[%s238 + $0x104] sm:$0xf]
        %v365 = vld [vmem:[%s238 + $0x108] sm:$0xf]
        %v366 = vld [vmem:[%s238 + $0x10c] sm:$0xf]
        %v367 = vld [vmem:[%s238 + $0x110] sm:$0xf]
        %v368 = vld [vmem:[%s238 + $0x114] sm:$0xf]
        %v369 = vld [vmem:[%s238 + $0x118] sm:$0xf]
        %v370 = vld [vmem:[%s238 + $0x11c] sm:$0xf]
        %v371 = vld [vmem:[%s238 + $0x120] sm:$0xf]
        %v372 = vld [vmem:[%s238 + $0x124] sm:$0xf]
        %v373 = vld [vmem:[%s238 + $0x128] sm:$0xf]
        %v374 = vld [vmem:[%s238 + $0x12c] sm:$0xf]
        %v375 = vld [vmem:[%s238 + $0x130] sm:$0xf]
        %v376 = vld [vmem:[%s238 + $0x134] sm:$0xf]
        %v377 = vld [vmem:[%s238 + $0x138] sm:$0xf]
        %v378 = vld [vmem:[%s238 + $0x13c] sm:$0xf]
        %v379 = vld [vmem:[%s238 + $0x140] sm:$0xf]
        %v380 = vld [vmem:[%s238 + $0x144] sm:$0xf]
        %v381 = vld [vmem:[%s238 + $0x148] sm:$0xf]
        %v382 = vld [vmem:[%s238 + $0x14c] sm:$0xf]
        %v383 = vld [vmem:[%s238 + $0x150] sm:$0xf]
        %v384 = vld [vmem:[%s238 + $0x154] sm:$0xf]
        %v385 = vld [vmem:[%s238 + $0x158] sm:$0xf]
        %v386 = vld [vmem:[%s238 + $0x15c] sm:$0xf]
        %v387 = vld [vmem:[%s238 + $0x160] sm:$0xf]
        %v388 = vld [vmem:[%s238 + $0x164] sm:$0xf]
        %v389 = vld [vmem:[%s238 + $0x168] sm:$0xf]
        %v390 = vld [vmem:[%s238 + $0x16c] sm:$0xf]
        %v391 = vld [vmem:[%s238 + $0x170] sm:$0xf]
        %v392 = vld [vmem:[%s238 + $0x174] sm:$0xf]
        %v393 = vld [vmem:[%s238 + $0x178] sm:$0xf]
        %v394 = vld [vmem:[%s238 + $0x17c] sm:$0xf]
        %v395 = vld [vmem:[%s238 + $0x180] sm:$0x1]
        %v396 = vld [vmem:[%s273] sm:$0x1]
        %v398 = vlaneseq
        %v399 = vshrl.u32 %v398, 7
        %v400 = vsub.s32 0, %v399
        %v401 = vrot.slane %v396, %v400
        %v500 = vunpack.c.l.b16 %v299
        %v501 = vunpack.c.l.b16 %v300
        %v502 = vunpack.c.l.b16 %v301
        %v503 = vunpack.c.l.b16 %v302
        %v504 = vunpack.c.l.b16 %v303
        %v505 = vunpack.c.l.b16 %v304
        %v506 = vunpack.c.l.b16 %v305
        %v507 = vunpack.c.l.b16 %v306
        %v508 = vunpack.c.l.b16 %v307
        %v509 = vunpack.c.l.b16 %v308
        %v510 = vunpack.c.l.b16 %v309
        %v511 = vunpack.c.l.b16 %v310
        %v512 = vunpack.c.l.b16 %v311
        %v513 = vunpack.c.l.b16 %v312
        %v514 = vunpack.c.l.b16 %v313
        %v515 = vunpack.c.l.b16 %v314
        %v516 = vunpack.c.l.b16 %v315
        %v517 = vunpack.c.l.b16 %v316
        %v518 = vunpack.c.l.b16 %v317
        %v519 = vunpack.c.l.b16 %v318
        %v520 = vunpack.c.l.b16 %v319
        %v521 = vunpack.c.l.b16 %v320
        %v522 = vunpack.c.l.b16 %v321
        %v523 = vunpack.c.l.b16 %v322
        %v524 = vunpack.c.l.b16 %v323
        %v525 = vunpack.c.l.b16 %v324
        %v526 = vunpack.c.l.b16 %v325
        %v527 = vunpack.c.l.b16 %v326
        %v528 = vunpack.c.l.b16 %v327
        %v529 = vunpack.c.l.b16 %v328
        %v530 = vunpack.c.l.b16 %v329
        %v531 = vunpack.c.l.b16 %v330
        %v532 = vunpack.c.l.b16 %v331
        %v533 = vunpack.c.l.b16 %v332
        %v534 = vunpack.c.l.b16 %v333
        %v535 = vunpack.c.l.b16 %v334
        %v536 = vunpack.c.l.b16 %v335
        %v537 = vunpack.c.l.b16 %v336
        %v538 = vunpack.c.l.b16 %v337
        %v539 = vunpack.c.l.b16 %v338
        %v540 = vunpack.c.l.b16 %v339
        %v541 = vunpack.c.l.b16 %v340
        %v542 = vunpack.c.l.b16 %v341
        %v543 = vunpack.c.l.b16 %v342
        %v544 = vunpack.c.l.b16 %v343
        %v545 = vunpack.c.l.b16 %v344
        %v546 = vunpack.c.l.b16 %v345
        %v547 = vunpack.c.l.b16 %v346
        %v548 = vunpack.c.l.b16 %v347
        %v549 = vunpack.c.l.b16 %v348
        %v550 = vunpack.c.l.b16 %v349
        %v551 = vunpack.c.l.b16 %v350
        %v552 = vunpack.c.l.b16 %v351
        %v553 = vunpack.c.l.b16 %v352
        %v554 = vunpack.c.l.b16 %v353
        %v555 = vunpack.c.l.b16 %v354
        %v556 = vunpack.c.l.b16 %v355
        %v557 = vunpack.c.l.b16 %v356
        %v558 = vunpack.c.l.b16 %v357
        %v559 = vunpack.c.l.b16 %v358
        %v560 = vunpack.c.l.b16 %v359
        %v561 = vunpack.c.l.b16 %v360
        %v562 = vunpack.c.l.b16 %v361
        %v563 = vunpack.c.l.b16 %v362
        %v564 = vunpack.c.l.b16 %v363
        %v565 = vunpack.c.l.b16 %v364
        %v566 = vunpack.c.l.b16 %v365
        %v567 = vunpack.c.l.b16 %v366
        %v568 = vunpack.c.l.b16 %v367
        %v569 = vunpack.c.l.b16 %v368
        %v570 = vunpack.c.l.b16 %v369
        %v571 = vunpack.c.l.b16 %v370
        %v572 = vunpack.c.l.b16 %v371
        %v573 = vunpack.c.l.b16 %v372
        %v574 = vunpack.c.l.b16 %v373
        %v575 = vunpack.c.l.b16 %v374
        %v576 = vunpack.c.l.b16 %v375
        %v577 = vunpack.c.l.b16 %v376
        %v578 = vunpack.c.l.b16 %v377
        %v579 = vunpack.c.l.b16 %v378
        %v580 = vunpack.c.l.b16 %v379
        %v581 = vunpack.c.l.b16 %v380
        %v582 = vunpack.c.l.b16 %v381
        %v583 = vunpack.c.l.b16 %v382
        %v584 = vunpack.c.l.b16 %v383
        %v585 = vunpack.c.l.b16 %v384
        %v586 = vunpack.c.l.b16 %v385
        %v587 = vunpack.c.l.b16 %v386
        %v588 = vunpack.c.l.b16 %v387
        %v589 = vunpack.c.l.b16 %v388
        %v590 = vunpack.c.l.b16 %v389
        %v591 = vunpack.c.l.b16 %v390
        %v592 = vunpack.c.l.b16 %v391
        %v593 = vunpack.c.l.b16 %v392
        %v594 = vunpack.c.l.b16 %v393
        %v595 = vunpack.c.l.b16 %v394
        %v596 = vunpack.c.l.b16 %v395
        %v597 = vpack.c.b16 %v501, %v500
        %v598 = vpack.c.b16 %v503, %v502
        %v599 = vpack.c.b16 %v505, %v504
        %v600 = vpack.c.b16 %v507, %v506
        %v601 = vpack.c.b16 %v509, %v508
        %v602 = vpack.c.b16 %v511, %v510
        %v603 = vpack.c.b16 %v513, %v512
        %v604 = vpack.c.b16 %v515, %v514
        %v605 = vpack.c.b16 %v517, %v516
        %v606 = vpack.c.b16 %v519, %v518
        %v607 = vpack.c.b16 %v521, %v520
        %v608 = vpack.c.b16 %v523, %v522
        %v609 = vpack.c.b16 %v525, %v524
        %v610 = vpack.c.b16 %v527, %v526
        %v611 = vpack.c.b16 %v529, %v528
        %v612 = vpack.c.b16 %v531, %v530
        %v613 = vpack.c.b16 %v533, %v532
        %v614 = vpack.c.b16 %v535, %v534
        %v615 = vpack.c.b16 %v537, %v536
        %v616 = vpack.c.b16 %v539, %v538
        %v617 = vpack.c.b16 %v541, %v540
        %v618 = vpack.c.b16 %v543, %v542
        %v619 = vpack.c.b16 %v545, %v544
        %v620 = vpack.c.b16 %v547, %v546
        %v621 = vpack.c.b16 %v549, %v548
        %v622 = vpack.c.b16 %v551, %v550
        %v623 = vpack.c.b16 %v553, %v552
        %v624 = vpack.c.b16 %v555, %v554
        %v625 = vpack.c.b16 %v557, %v556
        %v626 = vpack.c.b16 %v559, %v558
        %v627 = vpack.c.b16 %v561, %v560
        %v628 = vpack.c.b16 %v563, %v562
        %v629 = vpack.c.b16 %v565, %v564
        %v630 = vpack.c.b16 %v567, %v566
        %v631 = vpack.c.b16 %v569, %v568
        %v632 = vpack.c.b16 %v571, %v570
        %v633 = vpack.c.b16 %v573, %v572
        %v634 = vpack.c.b16 %v575, %v574
        %v635 = vpack.c.b16 %v577, %v576
        %v636 = vpack.c.b16 %v579, %v578
        %v637 = vpack.c.b16 %v581, %v580
        %v638 = vpack.c.b16 %v583, %v582
        %v639 = vpack.c.b16 %v585, %v584
        %v640 = vpack.c.b16 %v587, %v586
        %v641 = vpack.c.b16 %v589, %v588
        %v642 = vpack.c.b16 %v591, %v590
        %v643 = vpack.c.b16 %v593, %v592
        %v644 = vpack.c.b16 %v595, %v594
        %v645 = vpack.c.b16 %v596, %v596
        %vm694 = vcmask 7168
        %v696 = vsel %vm694, %v298, 0
        %vm698 = vcmask 1040384
        %v699 = vsel 0, 4294967295, 65535
        %v700 = vsel %vm698, %v699, 0
        %v702 = vand.u32 %v645, %v700
        %704 = vmatprep.subr.bf16.mxu0 0
        %705 = vmatpush1.bf16.msra.mxu0 %v597
        %706 = vmatprep.subr.bf16.mxu0 0
        %707 = vmatpush1.bf16.msra.mxu0 %v598
        %708 = vmatprep.subr.bf16.mxu0 0
        %709 = vmatpush1.bf16.msra.mxu0 %v599
        %710 = vmatprep.subr.bf16.mxu0 0
        %711 = vmatpush1.bf16.msra.mxu0 %v600
        %712 = vmatprep.subr.bf16.mxu0 0
        %713 = vmatpush1.bf16.msra.mxu0 %v601
        %714 = vmatprep.subr.bf16.mxu0 0
        %715 = vmatpush1.bf16.msra.mxu0 %v602
        %716 = vmatprep.subr.bf16.mxu0 0
        %717 = vmatpush1.bf16.msra.mxu0 %v603
        %718 = vmatprep.subr.bf16.mxu0 0
        %719 = vmatpush1.bf16.msra.mxu0 %v604
        %720 = vmatprep.subr.bf16.mxu0 0
        %721 = vmatpush1.bf16.msra.mxu0 %v605
        %722 = vmatprep.subr.bf16.mxu0 0
        %723 = vmatpush1.bf16.msra.mxu0 %v606
        %724 = vmatprep.subr.bf16.mxu0 0
        %725 = vmatpush1.bf16.msra.mxu0 %v607
        %726 = vmatprep.subr.bf16.mxu0 0
        %727 = vmatpush1.bf16.msra.mxu0 %v608
        %728 = vmatprep.subr.bf16.mxu0 0
        %729 = vmatpush1.bf16.msra.mxu0 %v609
        %730 = vmatprep.subr.bf16.mxu0 0
        %731 = vmatpush1.bf16.msra.mxu0 %v610
        %732 = vmatprep.subr.bf16.mxu0 0
        %733 = vmatpush1.bf16.msra.mxu0 %v611
        %734 = vmatprep.subr.bf16.mxu0 0
        %735 = vmatpush1.bf16.msra.mxu0 %v612
        %736 = vmatprep.mubr.bf16.mxu0 %v293
        %737 = vmatmul.mubr.bf16.gmra.mrb[0].mxu0 %v292
        %v738 = vpop.f32.mrb[0].mxu0
        %v739 = vadd.f32 %v401, %v738
        %v740 = vpop.f32.mrb[0].mxu0
        %v741 = vpop.f32.mrb[0].mxu0
        %v742 = vpop.f32.mrb[0].mxu0
        %743 = vdwg.mxu0
        %744 = vmatprep.subr.bf16.mxu0 0
        %745 = vmatpush1.bf16.msra.mxu0 %v613
        %746 = vmatprep.subr.bf16.mxu0 0
        %747 = vmatpush1.bf16.msra.mxu0 %v614
        %748 = vmatprep.subr.bf16.mxu0 0
        %749 = vmatpush1.bf16.msra.mxu0 %v615
        %750 = vmatprep.subr.bf16.mxu0 0
        %751 = vmatpush1.bf16.msra.mxu0 %v616
        %752 = vmatprep.subr.bf16.mxu0 0
        %753 = vmatpush1.bf16.msra.mxu0 %v617
        %754 = vmatprep.subr.bf16.mxu0 0
        %755 = vmatpush1.bf16.msra.mxu0 %v618
        %756 = vmatprep.subr.bf16.mxu0 0
        %757 = vmatpush1.bf16.msra.mxu0 %v619
        %758 = vmatprep.subr.bf16.mxu0 0
        %759 = vmatpush1.bf16.msra.mxu0 %v620
        %760 = vmatprep.subr.bf16.mxu0 0
        %761 = vmatpush1.bf16.msra.mxu0 %v621
        %762 = vmatprep.subr.bf16.mxu0 0
        %763 = vmatpush1.bf16.msra.mxu0 %v622
        %764 = vmatprep.subr.bf16.mxu0 0
        %765 = vmatpush1.bf16.msra.mxu0 %v623
        %766 = vmatprep.subr.bf16.mxu0 0
        %767 = vmatpush1.bf16.msra.mxu0 %v624
        %768 = vmatprep.subr.bf16.mxu0 0
        %769 = vmatpush1.bf16.msra.mxu0 %v625
        %770 = vmatprep.subr.bf16.mxu0 0
        %771 = vmatpush1.bf16.msra.mxu0 %v626
        %772 = vmatprep.subr.bf16.mxu0 0
        %773 = vmatpush1.bf16.msra.mxu0 %v627
        %774 = vmatprep.subr.bf16.mxu0 0
        %775 = vmatpush1.bf16.msra.mxu0 %v628
        %776 = vmatprep.mubr.bf16.mxu0 %v295
        %777 = vmatmul.mubr.bf16.gmra.mrb[0].mxu0 %v294
        %v778 = vpop.f32.mrb[0].mxu0
        %v779 = vadd.f32 %v739, %v778
        %v780 = vpop.f32.mrb[0].mxu0
        %v781 = vpop.f32.mrb[0].mxu0
        %v782 = vpop.f32.mrb[0].mxu0
        %783 = vdwg.mxu0
        %784 = vmatprep.subr.bf16.mxu0 0
        %785 = vmatpush1.bf16.msra.mxu0 %v629
        %786 = vmatprep.subr.bf16.mxu0 0
        %787 = vmatpush1.bf16.msra.mxu0 %v630
        %788 = vmatprep.subr.bf16.mxu0 0
        %789 = vmatpush1.bf16.msra.mxu0 %v631
        %790 = vmatprep.subr.bf16.mxu0 0
        %791 = vmatpush1.bf16.msra.mxu0 %v632
        %792 = vmatprep.subr.bf16.mxu0 0
        %793 = vmatpush1.bf16.msra.mxu0 %v633
        %794 = vmatprep.subr.bf16.mxu0 0
        %795 = vmatpush1.bf16.msra.mxu0 %v634
        %796 = vmatprep.subr.bf16.mxu0 0
        %797 = vmatpush1.bf16.msra.mxu0 %v635
        %798 = vmatprep.subr.bf16.mxu0 0
        %799 = vmatpush1.bf16.msra.mxu0 %v636
        %800 = vmatprep.subr.bf16.mxu0 0
        %801 = vmatpush1.bf16.msra.mxu0 %v637
        %802 = vmatprep.subr.bf16.mxu0 0
        %803 = vmatpush1.bf16.msra.mxu0 %v638
        %804 = vmatprep.subr.bf16.mxu0 0
        %805 = vmatpush1.bf16.msra.mxu0 %v639
        %806 = vmatprep.subr.bf16.mxu0 0
        %807 = vmatpush1.bf16.msra.mxu0 %v640
        %808 = vmatprep.subr.bf16.mxu0 0
        %809 = vmatpush1.bf16.msra.mxu0 %v641
        %810 = vmatprep.subr.bf16.mxu0 0
        %811 = vmatpush1.bf16.msra.mxu0 %v642
        %812 = vmatprep.subr.bf16.mxu0 0
        %813 = vmatpush1.bf16.msra.mxu0 %v643
        %814 = vmatprep.subr.bf16.mxu0 0
        %815 = vmatpush1.bf16.msra.mxu0 %v644
        %816 = vmatprep.mubr.bf16.mxu0 %v297
        %817 = vmatmul.mubr.bf16.gmra.mrb[0].mxu0 %v296
        %v818 = vpop.f32.mrb[0].mxu0
        %v819 = vadd.f32 %v779, %v818
        %v820 = vpop.f32.mrb[0].mxu0
        %v821 = vpop.f32.mrb[0].mxu0
        %v822 = vpop.f32.mrb[0].mxu0
        %823 = vdwg.mxu0
        %824 = vmatprep.subr.bf16.mxu0 0
        %825 = vmatpush1.bf16.msra.mxu0 %v702
        %826 = vmatprep.subr.bf16.mxu0 0
        %827 = vmatpush1.bf16.msra.mxu0 0
        %828 = vmatprep.subr.bf16.mxu0 0
        %829 = vmatpush1.bf16.msra.mxu0 0
        %830 = vmatprep.subr.bf16.mxu0 0
        %831 = vmatpush1.bf16.msra.mxu0 0
        %832 = vmatprep.subr.bf16.mxu0 0
        %833 = vmatpush1.bf16.msra.mxu0 0
        %834 = vmatprep.subr.bf16.mxu0 0
        %835 = vmatpush1.bf16.msra.mxu0 0
        %836 = vmatprep.subr.bf16.mxu0 0
        %837 = vmatpush1.bf16.msra.mxu0 0
        %838 = vmatprep.subr.bf16.mxu0 0
        %839 = vmatpush1.bf16.msra.mxu0 0
        %840 = vmatprep.subr.bf16.mxu0 0
        %841 = vmatpush1.bf16.msra.mxu0 0
        %842 = vmatprep.subr.bf16.mxu0 0
        %843 = vmatpush1.bf16.msra.mxu0 0
        %844 = vmatprep.subr.bf16.mxu0 0
        %845 = vmatpush1.bf16.msra.mxu0 0
        %846 = vmatprep.subr.bf16.mxu0 0
        %847 = vmatpush1.bf16.msra.mxu0 0
        %848 = vmatprep.subr.bf16.mxu0 0
        %849 = vmatpush1.bf16.msra.mxu0 0
        %850 = vmatprep.subr.bf16.mxu0 0
        %851 = vmatpush1.bf16.msra.mxu0 0
        %852 = vmatprep.subr.bf16.mxu0 0
        %853 = vmatpush1.bf16.msra.mxu0 0
        %854 = vmatprep.subr.bf16.mxu0 0
        %855 = vmatpush1.bf16.msra.mxu0 0
        %856 = vmatprep.mubr.bf16.mxu0 0
        %857 = vmatmul.mubr.bf16.gmra.mrb[0].mxu0 %v696
        %v858 = vpop.f32.mrb[0].mxu0
        %v859 = vadd.f32 %v819, %v858
        %v860 = vpop.f32.mrb[0].mxu0
        %v861 = vpop.f32.mrb[0].mxu0
        %v862 = vpop.f32.mrb[0].mxu0
        %863 = vdwg.mxu0
        %v864 = vmax.f32 %v859, 0.0
        %v865 = vld [vmem:[%s276] sm:$0x1]
        %v867 = vlaneseq
        %v868 = vshrl.u32 %v867, 7
        %v869 = vsub.s32 0, %v868
        %v870 = vrot.slane %v865, %v869
        %v872 = vmul.f32 %v864, %v870
        %873 = vadd.xlane.f32.xlu0 %v872
        %v874 = vpop.xlane.xlu0 %873
        %875 = vst.msk [vmem:[%s283] sm:$0xff] %vm694, %v874
        %p876 = scmp.lt.s32.totalorder %s24, 1
        %s877 = scalar_select %p876, %s24, 1
        %p878 = scmp.lt.s32.totalorder %s23, 0
        %s879 = scalar_select %p878, %s23, 0
        %s880 = sadd.s32 %s879, %s877
        %s881 = smul.addr %s880, 8
        %s882 = scalar_lea.vmem %s4, %s881
        // Predicated region
        $region45: #{tpu_custom_call.1} parent=35 // pred_check
          %p883 = pneg %p155
        $region46: #{tpu_custom_call.1} parent=35 // pred_check_branch
          %885 = sbr.rel (%p883) target = $region48
        $region47: #{tpu_custom_call.1} parent=35 // pred_region
          _
        $region48: #{tpu_custom_call.1} parent=35 // pred_fallthru
          _
      $region36: #{tpu_custom_call.1} parent=5 // pred_fallthru
        _
      %p886 = scmp.le.s32.totalorder 2, %s14
      // Predicated region
      $region49: #{tpu_custom_call.1} parent=5 // pred_check
        %p887 = pneg %p886
      $region50: #{tpu_custom_call.1} parent=5 // pred_check_branch
        %889 = sbr.rel (%p887) target = $region52
      $region51: #{tpu_custom_call.1} parent=5 // pred_region
        %s890 = ssub.s32 %s14, 2
        // Predicated region
        $region53: #{tpu_custom_call.1} parent=51 // pred_check
          %p891 = pneg %p161
        $region54: #{tpu_custom_call.1} parent=51 // pred_check_branch
          %893 = sbr.rel (%p891) target = $region56
        $region55: #{tpu_custom_call.1} parent=51 // pred_region
          %p894 = scmp.lt.s32.totalorder %s26, 1
          %s895 = scalar_select %p894, %s26, 1
          %p896 = scmp.lt.s32.totalorder %s25, 0
          %s897 = scalar_select %p896, %s25, 0
          %s898 = sadd.s32 %s897, %s895
          %s899 = smul.addr %s898, 8
          %s900 = scalar_lea.vmem %s4, %s899
        $region56: #{tpu_custom_call.1} parent=51 // pred_fallthru
          _
      $region52: #{tpu_custom_call.1} parent=5 // pred_fallthru
        _
    $region6: #{tpu_custom_call.1} parent=1 // loop_footer
      %s18 = sadd.s32 1, %s14
    $region7: #{tpu_custom_call.1} parent=1 // loop_footer_branch
      %13 = sbr.rel target = $region3
    $region8: #{tpu_custom_call.1} parent=1 // loop_exit
      _
    %901 = vsyncpa [#allocation3], 1
    %s902 = scalar_lea.sflag [#allocation3], 1
    %903 = vsyncpa %s902, 1
    %904 = vsyncpa [#allocation5], 1
    %s905 = scalar_lea.sflag [#allocation5], 1
    %906 = vsyncpa %s905, 1

</llo_original>
